<compile_context>
chip_gen: v5e
topology: v5e:2x2
jax: 0.10.0
libtpu: 0.0.40
codegen_flags: <defaults>
</compile_context>

<pallas_src>
import math

import jax
import jax.numpy as jnp
from jax.experimental import pallas as pl
from jax.experimental.pallas import tpu as pltpu

LANE = 128      # vreg lane width
SUBLANE = 8     # vreg sublane count (f32)


def _round_up(n, m):
    return ((n + m - 1) // m) * m


def _mlp_kernel(*refs):
    """refs = (x_ref, w0_ref, ..., wL_ref, b_ref, out_ref).

    Hidden layers: h = relu(h @ w)  (dropout is identity at inference).
    Final layer:   out = h @ w_last + b.
    Activations/weights are bf16 into the MXU; accumulation, ReLU and the bias
    add happen in f32; the result is stored as f32.
    """
    x_ref = refs[0]
    w_refs = refs[1:-2]
    b_ref = refs[-2]
    out_ref = refs[-1]

    h = x_ref[...]  # bf16 straight into the MXU (no redundant f32 cast)
    for w_ref in w_refs[:-1]:
        acc = jnp.dot(h, w_ref[...], preferred_element_type=jnp.float32)
        # ReLU in f32 on the VPU, then back to bf16 for the next MXU pass.
        h = jnp.maximum(acc, 0.0).astype(w_ref.dtype)
    y = jnp.dot(h, w_refs[-1][...], preferred_element_type=jnp.float32)
    y = y + b_ref[...]  # (1, out_pad) f32 bias broadcasts over the batch tile
    out_ref[...] = y.astype(out_ref.dtype)


def dnn_forward(x, weights_t, bias, *, batch_tile=256, param_dtype=jnp.bfloat16):
    """Pallas forward pass of DNN.

    x:         (B, in_dim) float32
    weights_t: list of (in_i, out_i) float32 (transposed from torch's (out, in))
    bias:      (out_dim,) float32 for the final layer
    Returns (B, out_dim) float32.
    """
    B, in_dim = x.shape
    out_dim = weights_t[-1].shape[1]

    # ---- batch tiling -------------------------------------------------------
    b8 = _round_up(B, SUBLANE)
    tile = min(batch_tile, b8)
    # v7x has 2 TensorCores: keep >= 2 parallel grid steps when the batch allows.
    if b8 >= 2 * LANE and b8 <= tile:
        tile = _round_up(pl.cdiv(b8, 2), SUBLANE)
    B_pad = _round_up(B, tile)
    grid = (B_pad // tile,)

    # ---- lane-pad feature dims, cast params to bf16 -------------------------
    dims = [in_dim] + [w.shape[1] for w in weights_t]
    dims_p = [_round_up(d, LANE) for d in dims]
    out_pad = dims_p[-1]

    x_p = jnp.pad(x, ((0, B_pad - B), (0, dims_p[0] - in_dim))).astype(param_dtype)
    weights_p = []
    for li, w in enumerate(weights_t):
        wp = jnp.pad(
            w, ((0, dims_p[li] - w.shape[0]), (0, dims_p[li + 1] - w.shape[1]))
        ).astype(param_dtype)
        weights_p.append(wp)
    bias_p = jnp.pad(bias, (0, out_pad - out_dim)).reshape(1, out_pad).astype(jnp.float32)

    # ---- explicit VMEM budget (headroom, but never above v7x's 64 MiB) ------
    w_bytes = sum(int(w.size) * w.dtype.itemsize for w in weights_p)
    io_bytes = 2 * tile * dims_p[0] * x_p.dtype.itemsize + 2 * tile * out_pad * 4
    act_bytes = 4 * tile * max(dims_p) * 4  # a few live f32 intermediates
    need = 2 * w_bytes + io_bytes + act_bytes + out_pad * 4
    vmem_limit = int(min(max(2 * need + (8 << 20), 32 << 20), 64 << 20))

    def build(single_buffer_params):
        # Constant-index weights/bias don't need a second pipeline buffer.
        pkw = {"pipeline_mode": pl.Buffered(1)} if single_buffer_params else {}
        in_specs = [pl.BlockSpec((tile, dims_p[0]), lambda i: (i, 0))]
        for w in weights_p:
            in_specs.append(pl.BlockSpec(w.shape, lambda i: (0, 0), **pkw))
        in_specs.append(pl.BlockSpec((1, out_pad), lambda i: (0, 0), **pkw))
        out_specs = pl.BlockSpec((tile, out_pad), lambda i: (i, 0))
        return pl.pallas_call(
            _mlp_kernel,
            out_shape=jax.ShapeDtypeStruct((B_pad, out_pad), jnp.float32),
            grid=grid,
            in_specs=in_specs,
            out_specs=out_specs,
            compiler_params=pltpu.CompilerParams(
                dimension_semantics=("parallel",),
                vmem_limit_bytes=vmem_limit,
            ),
        )

    try:
        y_p = build(True)(x_p, *weights_p, bias_p)
    except Exception:
        # If this jax build rejects pipeline_mode=pl.Buffered(1), fall back to
        # default double-buffered specs (correctness identical, more VMEM).
        y_p = build(False)(x_p, *weights_p, bias_p)

    return y_p[:B, :out_dim]


def init_dnn_params(key, in_dim, out_dim, hidden_dims):
    """Matches DNN.reset_parameters:
      weight ~ Normal(0, 1/sqrt(out_features))   (torch layout (out, in))
      bias   ~ Uniform(-1/sqrt(fan_in), 1/sqrt(fan_in))  (final layer only)
    Returns weights already transposed to (in, out) for the kernel.
    """
    dims = [in_dim] + list(hidden_dims) + [out_dim]
    weights_t = []
    for i in range(len(dims) - 1):
        key, sub = jax.random.split(key)
        fan_out = dims[i + 1]
        w = jax.random.normal(sub, (fan_out, dims[i]), dtype=jnp.float32)
        w = w * (1.0 / math.sqrt(fan_out))
        weights_t.append(w.T)  # (in, out)
    key, sub = jax.random.split(key)
    bound = 1.0 / math.sqrt(dims[-2])
    bias = jax.random.uniform(
        sub, (out_dim,), dtype=jnp.float32, minval=-bound, maxval=bound
    )
    return weights_t, bias


def _reference_forward(x, weights_t, bias, compute_dtype=jnp.float32):
    h = x.astype(compute_dtype)
    for w in weights_t[:-1]:
        h = jnp.dot(h, w.astype(compute_dtype), preferred_element_type=jnp.float32)
        h = jnp.maximum(h, 0.0).astype(compute_dtype)
    y = jnp.dot(h, weights_t[-1].astype(compute_dtype),
                preferred_element_type=jnp.float32)
    return y + bias[None, :]


if __name__ == "__main__":
    # Small shapes consistent with the module: an MLP on (batch, in_dim).
    in_dim = 16
    hidden_dims = [32, 16]
    out_dim = 8
    batch = 16

    key = jax.random.PRNGKey(0)
    key, xkey = jax.random.split(key)
    x = jax.random.normal(xkey, (batch, in_dim), dtype=jnp.float32)
    weights_t, bias = init_dnn_params(key, in_dim, out_dim, hidden_dims)

    y = dnn_forward(x, weights_t, bias)
    y = jax.block_until_ready(y)
    assert y.shape == (batch, out_dim)
    assert y.dtype == jnp.float32

    # Loose check vs the module's f32 math (bf16 operand quantization error).
    y_f32 = _reference_forward(x, weights_t, bias)
    assert jnp.allclose(y, y_f32, atol=5e-2, rtol=5e-2)
    # Tight check vs a bf16-operand / f32-accumulation reference.
    y_bf16 = _reference_forward(x, weights_t, bias, compute_dtype=jnp.bfloat16)
    assert jnp.allclose(y, y_bf16, atol=1e-2, rtol=1e-2)

    print("KERNEL_OK")
</pallas_src>

<mosaic_0001>
module attributes {stable_mosaic.version = 11 : i64} {
  func.func @_mlp_kernel(%arg0: i32, %arg1: memref<16x128xbf16, #tpu.memory_space<vmem>>, %arg2: memref<128x128xbf16, #tpu.memory_space<vmem>>, %arg3: memref<128x128xbf16, #tpu.memory_space<vmem>>, %arg4: memref<128x128xbf16, #tpu.memory_space<vmem>>, %arg5: memref<1x128xf32, #tpu.memory_space<vmem>>, %arg6: memref<16x128xf32, #tpu.memory_space<vmem>>) attributes {dimension_semantics = [#tpu.dimension_semantics<parallel>], iteration_bounds = array<i64: 1>, scalar_prefetch = 0 : i64, scratch_operands = 0 : i64, tpu.core_type = #tpu.core_type<tc>, window_params = [{transform_indices = @transform_0, window_bounds = array<i64: 16, 128>}, {pipeline_mode = #tpu.pipeline_mode<synchronous>, transform_indices = @transform_1, window_bounds = array<i64: 128, 128>}, {pipeline_mode = #tpu.pipeline_mode<synchronous>, transform_indices = @transform_2, window_bounds = array<i64: 128, 128>}, {pipeline_mode = #tpu.pipeline_mode<synchronous>, transform_indices = @transform_3, window_bounds = array<i64: 128, 128>}, {pipeline_mode = #tpu.pipeline_mode<synchronous>, transform_indices = @transform_4, window_bounds = array<i64: 1, 128>}, {transform_indices = @transform_5, window_bounds = array<i64: 16, 128>}]} {
    %c0 = arith.constant 0 : index
    %c0_0 = arith.constant 0 : index
    %0 = vector.load %arg1[%c0, %c0_0] : memref<16x128xbf16, #tpu.memory_space<vmem>>, vector<16x128xbf16>
    %c0_1 = arith.constant 0 : index
    %c0_2 = arith.constant 0 : index
    %1 = vector.load %arg2[%c0_1, %c0_2] : memref<128x128xbf16, #tpu.memory_space<vmem>>, vector<128x128xbf16>
    %cst = arith.constant dense<0.000000e+00> : vector<16x128xf32>
    %2 = tpu.matmul %0, %1, %cst {dimension_numbers = #tpu.dot_dimension_numbers<[1], [0], [0], [1], [0, 0, 1, 1], [], []>} : vector<16x128xbf16>, vector<128x128xbf16>, vector<16x128xf32> -> vector<16x128xf32>
    %cst_3 = arith.constant 0.000000e+00 : f32
    %3 = vector.broadcast %cst_3 : f32 to vector<16x128xf32>
    %4 = arith.maximumf %2, %3 : vector<16x128xf32>
    %5 = arith.truncf %4 : vector<16x128xf32> to vector<16x128xbf16>
    %c0_4 = arith.constant 0 : index
    %c0_5 = arith.constant 0 : index
    %6 = vector.load %arg3[%c0_4, %c0_5] : memref<128x128xbf16, #tpu.memory_space<vmem>>, vector<128x128xbf16>
    %cst_6 = arith.constant dense<0.000000e+00> : vector<16x128xf32>
    %7 = tpu.matmul %5, %6, %cst_6 {dimension_numbers = #tpu.dot_dimension_numbers<[1], [0], [0], [1], [0, 0, 1, 1], [], []>} : vector<16x128xbf16>, vector<128x128xbf16>, vector<16x128xf32> -> vector<16x128xf32>
    %cst_7 = arith.constant 0.000000e+00 : f32
    %8 = vector.broadcast %cst_7 : f32 to vector<16x128xf32>
    %9 = arith.maximumf %7, %8 : vector<16x128xf32>
    %10 = arith.truncf %9 : vector<16x128xf32> to vector<16x128xbf16>
    %c0_8 = arith.constant 0 : index
    %c0_9 = arith.constant 0 : index
    %11 = vector.load %arg4[%c0_8, %c0_9] : memref<128x128xbf16, #tpu.memory_space<vmem>>, vector<128x128xbf16>
    %cst_10 = arith.constant dense<0.000000e+00> : vector<16x128xf32>
    %12 = tpu.matmul %10, %11, %cst_10 {dimension_numbers = #tpu.dot_dimension_numbers<[1], [0], [0], [1], [0, 0, 1, 1], [], []>} : vector<16x128xbf16>, vector<128x128xbf16>, vector<16x128xf32> -> vector<16x128xf32>
    %c0_11 = arith.constant 0 : index
    %c0_12 = arith.constant 0 : index
    %13 = vector.load %arg5[%c0_11, %c0_12] : memref<1x128xf32, #tpu.memory_space<vmem>>, vector<1x128xf32>
    %14 = vector.broadcast %13 : vector<1x128xf32> to vector<16x128xf32>
    %15 = arith.addf %12, %14 : vector<16x128xf32>
    %c0_13 = arith.constant 0 : index
    %c0_14 = arith.constant 0 : index
    %16 = vector.load %arg6[%c0_13, %c0_14] : memref<16x128xf32, #tpu.memory_space<vmem>>, vector<16x128xf32>
    tpu.vector_store %arg6[%c0_13, %c0_14], %15 {strides = array<i32>} : memref<16x128xf32, #tpu.memory_space<vmem>>, vector<16x128xf32>,
    return
  }
  func.func @transform_0(%arg0: i32) -> (i32, i32) {
    %c0_i32 = arith.constant 0 : i32
    %c0_i32_0 = arith.constant 0 : i32
    return %arg0, %c0_i32 : i32, i32
  }
  func.func @transform_1(%arg0: i32) -> (i32, i32) {
    %c0_i32 = arith.constant 0 : i32
    %c0_i32_0 = arith.constant 0 : i32
    %c0_i32_1 = arith.constant 0 : i32
    return %c0_i32, %c0_i32_0 : i32, i32
  }
  func.func @transform_2(%arg0: i32) -> (i32, i32) {
    %c0_i32 = arith.constant 0 : i32
    %c0_i32_0 = arith.constant 0 : i32
    %c0_i32_1 = arith.constant 0 : i32
    return %c0_i32, %c0_i32_0 : i32, i32
  }
  func.func @transform_3(%arg0: i32) -> (i32, i32) {
    %c0_i32 = arith.constant 0 : i32
    %c0_i32_0 = arith.constant 0 : i32
    %c0_i32_1 = arith.constant 0 : i32
    return %c0_i32, %c0_i32_0 : i32, i32
  }
  func.func @transform_4(%arg0: i32) -> (i32, i32) {
    %c0_i32 = arith.constant 0 : i32
    %c0_i32_0 = arith.constant 0 : i32
    %c0_i32_1 = arith.constant 0 : i32
    return %c0_i32, %c0_i32_0 : i32, i32
  }
  func.func @transform_5(%arg0: i32) -> (i32, i32) {
    %c0_i32 = arith.constant 0 : i32
    %c0_i32_0 = arith.constant 0 : i32
    return %arg0, %c0_i32 : i32, i32
  }
}

module attributes {stable_mosaic.version = 11 : i64} {
  func.func @_mlp_kernel(%arg0: i32, %arg1: memref<16x128xbf16, #tpu.memory_space<vmem>>, %arg2: memref<128x128xbf16, #tpu.memory_space<vmem>>, %arg3: memref<128x128xbf16, #tpu.memory_space<vmem>>, %arg4: memref<128x128xbf16, #tpu.memory_space<vmem>>, %arg5: memref<1x128xf32, #tpu.memory_space<vmem>>, %arg6: memref<16x128xf32, #tpu.memory_space<vmem>>) attributes {dimension_semantics = [#tpu.dimension_semantics<parallel>], iteration_bounds = array<i64: 1>, scalar_prefetch = 0 : i64, scratch_operands = 0 : i64, tpu.core_type = #tpu.core_type<tc>, window_params = [{transform_indices = @transform_0, window_bounds = array<i64: 16, 128>}, {pipeline_mode = #tpu.pipeline_mode<synchronous>, transform_indices = @transform_1, window_bounds = array<i64: 128, 128>}, {pipeline_mode = #tpu.pipeline_mode<synchronous>, transform_indices = @transform_2, window_bounds = array<i64: 128, 128>}, {pipeline_mode = #tpu.pipeline_mode<synchronous>, transform_indices = @transform_3, window_bounds = array<i64: 128, 128>}, {pipeline_mode = #tpu.pipeline_mode<synchronous>, transform_indices = @transform_4, window_bounds = array<i64: 1, 128>}, {transform_indices = @transform_5, window_bounds = array<i64: 16, 128>}]} {
    %c0 = arith.constant 0 : index
    %c0_0 = arith.constant 0 : index
    %0 = vector.load %arg1[%c0, %c0_0] : memref<16x128xbf16, #tpu.memory_space<vmem>>, vector<16x128xbf16>
    %c0_1 = arith.constant 0 : index
    %c0_2 = arith.constant 0 : index
    %1 = vector.load %arg2[%c0_1, %c0_2] : memref<128x128xbf16, #tpu.memory_space<vmem>>, vector<128x128xbf16>
    %cst = arith.constant dense<0.000000e+00> : vector<16x128xf32>
    %2 = tpu.matmul %0, %1, %cst {dimension_numbers = #tpu.dot_dimension_numbers<[1], [0], [0], [1], [0, 0, 1, 1], [], []>} : vector<16x128xbf16>, vector<128x128xbf16>, vector<16x128xf32> -> vector<16x128xf32>
    %cst_3 = arith.constant 0.000000e+00 : f32
    %3 = vector.broadcast %cst_3 : f32 to vector<16x128xf32>
    %4 = arith.maximumf %2, %3 : vector<16x128xf32>
    %5 = arith.truncf %4 : vector<16x128xf32> to vector<16x128xbf16>
    %c0_4 = arith.constant 0 : index
    %c0_5 = arith.constant 0 : index
    %6 = vector.load %arg3[%c0_4, %c0_5] : memref<128x128xbf16, #tpu.memory_space<vmem>>, vector<128x128xbf16>
    %cst_6 = arith.constant dense<0.000000e+00> : vector<16x128xf32>
    %7 = tpu.matmul %5, %6, %cst_6 {dimension_numbers = #tpu.dot_dimension_numbers<[1], [0], [0], [1], [0, 0, 1, 1], [], []>} : vector<16x128xbf16>, vector<128x128xbf16>, vector<16x128xf32> -> vector<16x128xf32>
    %cst_7 = arith.constant 0.000000e+00 : f32
    %8 = vector.broadcast %cst_7 : f32 to vector<16x128xf32>
    %9 = arith.maximumf %7, %8 : vector<16x128xf32>
    %10 = arith.truncf %9 : vector<16x128xf32> to vector<16x128xbf16>
    %c0_8 = arith.constant 0 : index
    %c0_9 = arith.constant 0 : index
    %11 = vector.load %arg4[%c0_8, %c0_9] : memref<128x128xbf16, #tpu.memory_space<vmem>>, vector<128x128xbf16>
    %cst_10 = arith.constant dense<0.000000e+00> : vector<16x128xf32>
    %12 = tpu.matmul %10, %11, %cst_10 {dimension_numbers = #tpu.dot_dimension_numbers<[1], [0], [0], [1], [0, 0, 1, 1], [], []>} : vector<16x128xbf16>, vector<128x128xbf16>, vector<16x128xf32> -> vector<16x128xf32>
    %c0_11 = arith.constant 0 : index
    %c0_12 = arith.constant 0 : index
    %13 = vector.load %arg5[%c0_11, %c0_12] : memref<1x128xf32, #tpu.memory_space<vmem>>, vector<1x128xf32>
    %14 = vector.broadcast %13 : vector<1x128xf32> to vector<16x128xf32>
    %15 = arith.addf %12, %14 : vector<16x128xf32>
    %c0_13 = arith.constant 0 : index
    %c0_14 = arith.constant 0 : index
    %16 = vector.load %arg6[%c0_13, %c0_14] : memref<16x128xf32, #tpu.memory_space<vmem>>, vector<16x128xf32>
    tpu.vector_store %arg6[%c0_13, %c0_14], %15 {strides = array<i32>} : memref<16x128xf32, #tpu.memory_space<vmem>>, vector<16x128xf32>,
    return
  }
  func.func @transform_0(%arg0: i32) -> (i32, i32) {
    %c0_i32 = arith.constant 0 : i32
    %c0_i32_0 = arith.constant 0 : i32
    return %arg0, %c0_i32 : i32, i32
  }
  func.func @transform_1(%arg0: i32) -> (i32, i32) {
    %c0_i32 = arith.constant 0 : i32
    %c0_i32_0 = arith.constant 0 : i32
    %c0_i32_1 = arith.constant 0 : i32
    return %c0_i32, %c0_i32_0 : i32, i32
  }
  func.func @transform_2(%arg0: i32) -> (i32, i32) {
    %c0_i32 = arith.constant 0 : i32
    %c0_i32_0 = arith.constant 0 : i32
    %c0_i32_1 = arith.constant 0 : i32
    return %c0_i32, %c0_i32_0 : i32, i32
  }
  func.func @transform_3(%arg0: i32) -> (i32, i32) {
    %c0_i32 = arith.constant 0 : i32
    %c0_i32_0 = arith.constant 0 : i32
    %c0_i32_1 = arith.constant 0 : i32
    return %c0_i32, %c0_i32_0 : i32, i32
  }
  func.func @transform_4(%arg0: i32) -> (i32, i32) {
    %c0_i32 = arith.constant 0 : i32
    %c0_i32_0 = arith.constant 0 : i32
    %c0_i32_1 = arith.constant 0 : i32
    return %c0_i32, %c0_i32_0 : i32, i32
  }
  func.func @transform_5(%arg0: i32) -> (i32, i32) {
    %c0_i32 = arith.constant 0 : i32
    %c0_i32_0 = arith.constant 0 : i32
    return %arg0, %c0_i32 : i32, i32
  }
}

</mosaic_0001>

<llo_original>
// kernel: tpu_custom_call.1
$region0: #{tpu_custom_call.1}
  #allocation0 [shape = 'u32[]', space=smem, size = 0x4, offset = 0x4, fixed_abs, tag = 'smem constant byte address 0x4 - core index']
  #allocation1 [shape = 'u32[72,128]{1,0:T(1,128)}', space=vmem, size = 0x9000, scoped, tag = 'internal scratch']
  %s0 = inlined_call_operand.hbm [shape: bf16[16,128], index: 0, kind: input, shape index: {}]
  %s1 = inlined_call_operand.hbm [shape: bf16[128,128], index: 1, kind: input, shape index: {}]
  %s2 = inlined_call_operand.hbm [shape: bf16[128,128], index: 2, kind: input, shape index: {}]
  %s3 = inlined_call_operand.hbm [shape: bf16[128,128], index: 3, kind: input, shape index: {}]
  %s4 = inlined_call_operand.vmem [shape: f32[1,128], index: 4, kind: input, shape index: {}]
  %s5 = inlined_call_operand.hbm [shape: f32[16,128], index: 5, kind: output, shape index: {}]
  %s6 = sld [smem:[#allocation0]]
  $region46: #{tpu_custom_call.1} parent=0
    _
  %s8 = ssub.s32 1, %s6
  %s9 = scalar_select 0, %s8, %s6
  $region1: #{tpu_custom_call.1} parent=0
    #allocation2 [shape = 'u8[4096]{0}', space=vmem, size = 0x1000, scoped, tag = 'input window, operand 0, single buffered']
    #allocation3 [shape = 's32[1]{0}', space=sflag, size = 0x4, scoped, tag = 'scoped memory for tpu_custom_call.1']
    #allocation4 [shape = 's32[1]{0}', space=sflag, size = 0x4, scoped, tag = 'scoped memory for tpu_custom_call.1']
    #allocation5 [shape = 'u8[32768]{0}', space=vmem, size = 0x8000, scoped, tag = 'input window, operand 1, single buffered']
    #allocation6 [shape = 's32[1]{0}', space=sflag, size = 0x4, scoped, tag = 'scoped memory for tpu_custom_call.1']
    #allocation7 [shape = 'u8[32768]{0}', space=vmem, size = 0x8000, scoped, tag = 'input window, operand 2, single buffered']
    #allocation8 [shape = 'u8[32768]{0}', space=vmem, size = 0x8000, scoped, tag = 'input window, operand 3, single buffered']
    #allocation9 [shape = 's32[1]{0}', space=sflag, size = 0x4, scoped, tag = 'scoped memory for tpu_custom_call.1']
    #allocation10 [shape = 'u8[8192]{0}', space=vmem, size = 0x2000, scoped, tag = 'output window, operand 0, single buffered']
    %10 = vsyncpa [#allocation3], 0
    %11 = vsyncpa [#allocation6], 0
    %12 = vsyncpa [#allocation9], 0
    %13 = vsyncpa [#allocation4], 0
    // Predicated region
    $region2: #{tpu_custom_call.1} parent=1 // pred_check
      _
    $region3: #{tpu_custom_call.1} parent=1 // pred_check_branch
      %15 = sbr.rel (0) target = $region5
    $region4: #{tpu_custom_call.1} parent=1 // pred_region
      %17 = vsyncadd [#allocation3], 0
      %s18 = sshll.u32 %s0, 4
      %s19 = int_to_ptr.hbm [resolvable:$true] %s18
      %s20 = sshll.u32 [#allocation2], 4
      %s21 = int_to_ptr.vmem [resolvable:$true] %s20
      %26 = dma.hbm_to_vmem [thread:$0]  %s19, 128, %s21, [#allocation3], 64, 64, 4
    $region5: #{tpu_custom_call.1} parent=1 // pred_fallthru
      _
    // Predicated region
    $region6: #{tpu_custom_call.1} parent=1 // pred_check
      _
    $region7: #{tpu_custom_call.1} parent=1 // pred_check_branch
      %28 = sbr.rel (0) target = $region9
    $region8: #{tpu_custom_call.1} parent=1 // pred_region
      %30 = vsyncadd [#allocation6], 0
      %s31 = sshll.u32 %s1, 4
      %s32 = int_to_ptr.hbm [resolvable:$true] %s31
      %s33 = sshll.u32 [#allocation5], 4
      %s34 = int_to_ptr.vmem [resolvable:$true] %s33
      %39 = dma.hbm_to_vmem [thread:$0]  %s32, 1024, %s34, [#allocation6], 64, 64, 4
    $region9: #{tpu_custom_call.1} parent=1 // pred_fallthru
      _
    // Predicated region
    $region10: #{tpu_custom_call.1} parent=1 // pred_check
      _
    $region11: #{tpu_custom_call.1} parent=1 // pred_check_branch
      %41 = sbr.rel (0) target = $region13
    $region12: #{tpu_custom_call.1} parent=1 // pred_region
      %43 = vsyncadd [#allocation6], 0
      %s44 = sshll.u32 %s2, 4
      %s45 = int_to_ptr.hbm [resolvable:$true] %s44
      %s46 = sshll.u32 [#allocation7], 4
      %s47 = int_to_ptr.vmem [resolvable:$true] %s46
      %52 = dma.hbm_to_vmem [thread:$0]  %s45, 1024, %s47, [#allocation6], 64, 64, 4
    $region13: #{tpu_custom_call.1} parent=1 // pred_fallthru
      _
    // Predicated region
    $region14: #{tpu_custom_call.1} parent=1 // pred_check
      _
    $region15: #{tpu_custom_call.1} parent=1 // pred_check_branch
      %54 = sbr.rel (0) target = $region17
    $region16: #{tpu_custom_call.1} parent=1 // pred_region
      %56 = vsyncadd [#allocation9], 0
      %s57 = sshll.u32 %s3, 4
      %s58 = int_to_ptr.hbm [resolvable:$true] %s57
      %s59 = sshll.u32 [#allocation8], 4
      %s60 = int_to_ptr.vmem [resolvable:$true] %s59
      %65 = dma.hbm_to_vmem [thread:$0]  %s58, 1024, %s60, [#allocation9], 64, 64, 4
    $region17: #{tpu_custom_call.1} parent=1 // pred_fallthru
      _
    // Predicated region
    $region18: #{tpu_custom_call.1} parent=1 // pred_check
      _
    $region19: #{tpu_custom_call.1} parent=1 // pred_check_branch
      %67 = sbr.rel (0) target = $region21
    $region20: #{tpu_custom_call.1} parent=1 // pred_region
      _
    $region21: #{tpu_custom_call.1} parent=1 // pred_fallthru
      _
    // Predicated region
    $region22: #{tpu_custom_call.1} parent=1 // pred_check
      _
    $region23: #{tpu_custom_call.1} parent=1 // pred_check_branch
      %69 = sbr.rel (0) target = $region25
    $region24: #{tpu_custom_call.1} parent=1 // pred_region
      %71 = dma.done [#allocation3], 128
    $region25: #{tpu_custom_call.1} parent=1 // pred_fallthru
      _
    // Predicated region
    $region26: #{tpu_custom_call.1} parent=1 // pred_check
      _
    $region27: #{tpu_custom_call.1} parent=1 // pred_check_branch
      %73 = sbr.rel (0) target = $region29
    $region28: #{tpu_custom_call.1} parent=1 // pred_region
      %75 = dma.done [#allocation6], 1024
    $region29: #{tpu_custom_call.1} parent=1 // pred_fallthru
      _
    // Predicated region
    $region30: #{tpu_custom_call.1} parent=1 // pred_check
      _
    $region31: #{tpu_custom_call.1} parent=1 // pred_check_branch
      %77 = sbr.rel (0) target = $region33
    $region32: #{tpu_custom_call.1} parent=1 // pred_region
      %79 = dma.done [#allocation6], 1024
    $region33: #{tpu_custom_call.1} parent=1 // pred_fallthru
      _
    // Predicated region
    $region34: #{tpu_custom_call.1} parent=1 // pred_check
      _
    $region35: #{tpu_custom_call.1} parent=1 // pred_check_branch
      %81 = sbr.rel (0) target = $region37
    $region36: #{tpu_custom_call.1} parent=1 // pred_region
      %83 = dma.done [#allocation9], 1024
    $region37: #{tpu_custom_call.1} parent=1 // pred_fallthru
      _
    %v84 = vld [vmem:[#allocation2] sm:$0xf]
    %v85 = vld [vmem:[#allocation2 + $0x4] sm:$0xf]
    %v86 = vld [vmem:[#allocation5] sm:$0xf]
    %v87 = vld [vmem:[#allocation5 + $0x4] sm:$0xf]
    %v88 = vld [vmem:[#allocation5 + $0x8] sm:$0xf]
    %v89 = vld [vmem:[#allocation5 + $0xc] sm:$0xf]
    %v90 = vld [vmem:[#allocation5 + $0x10] sm:$0xf]
    %v91 = vld [vmem:[#allocation5 + $0x14] sm:$0xf]
    %v92 = vld [vmem:[#allocation5 + $0x18] sm:$0xf]
    %v93 = vld [vmem:[#allocation5 + $0x1c] sm:$0xf]
    %v94 = vld [vmem:[#allocation5 + $0x20] sm:$0xf]
    %v95 = vld [vmem:[#allocation5 + $0x24] sm:$0xf]
    %v96 = vld [vmem:[#allocation5 + $0x28] sm:$0xf]
    %v97 = vld [vmem:[#allocation5 + $0x2c] sm:$0xf]
    %v98 = vld [vmem:[#allocation5 + $0x30] sm:$0xf]
    %v99 = vld [vmem:[#allocation5 + $0x34] sm:$0xf]
    %v100 = vld [vmem:[#allocation5 + $0x38] sm:$0xf]
    %v101 = vld [vmem:[#allocation5 + $0x3c] sm:$0xf]
    %v104 = vunpack.c.l.b16 %v84
    %v105 = vunpack.c.l.b16 %v85
    %v106 = vpack.c.b16 %v105, %v104
    %v124 = vunpack.c.l.b16 %v86
    %v125 = vunpack.c.l.b16 %v87
    %v126 = vunpack.c.l.b16 %v88
    %v127 = vunpack.c.l.b16 %v89
    %v128 = vunpack.c.l.b16 %v90
    %v129 = vunpack.c.l.b16 %v91
    %v130 = vunpack.c.l.b16 %v92
    %v131 = vunpack.c.l.b16 %v93
    %v132 = vunpack.c.l.b16 %v94
    %v133 = vunpack.c.l.b16 %v95
    %v134 = vunpack.c.l.b16 %v96
    %v135 = vunpack.c.l.b16 %v97
    %v136 = vunpack.c.l.b16 %v98
    %v137 = vunpack.c.l.b16 %v99
    %v138 = vunpack.c.l.b16 %v100
    %v139 = vunpack.c.l.b16 %v101
    %v140 = vpack.c.b16 %v125, %v124
    %v141 = vpack.c.b16 %v127, %v126
    %v142 = vpack.c.b16 %v129, %v128
    %v143 = vpack.c.b16 %v131, %v130
    %v144 = vpack.c.b16 %v133, %v132
    %v145 = vpack.c.b16 %v135, %v134
    %v146 = vpack.c.b16 %v137, %v136
    %v147 = vpack.c.b16 %v139, %v138
    %156 = vmatpush.bf16.msra.mxu0 %v147
    %157 = vmatpush.bf16.msra.mxu0 %v146
    %158 = vmatpush.bf16.msra.mxu0 %v145
    %159 = vmatpush.bf16.msra.mxu0 %v144
    %160 = vmatpush.bf16.msra.mxu0 %v143
    %161 = vmatpush.bf16.msra.mxu0 %v142
    %162 = vmatpush.bf16.msra.mxu0 %v141
    %163 = vmatpush.bf16.msra.mxu0 %v140
    %164 = vmatmul.bf16.gmra.mxu0 %v106
    %v165 = vpop.f32.mrf.mxu0
    %v166 = vadd.f32 0.0, %v165
    %v167 = vpop.f32.mrf.mxu0
    %v168 = vadd.f32 0.0, %v167
    %169 = vdwg.mxu0
    %v170 = vmax.f32 %v166, 0.0
    %v171 = vmax.f32 %v168, 0.0
    %v172 = vpack.c.bf16 %v171, %v170
    %v173 = vld [vmem:[#allocation7] sm:$0xf]
    %v174 = vld [vmem:[#allocation7 + $0x4] sm:$0xf]
    %v175 = vld [vmem:[#allocation7 + $0x8] sm:$0xf]
    %v176 = vld [vmem:[#allocation7 + $0xc] sm:$0xf]
    %v177 = vld [vmem:[#allocation7 + $0x10] sm:$0xf]
    %v178 = vld [vmem:[#allocation7 + $0x14] sm:$0xf]
    %v179 = vld [vmem:[#allocation7 + $0x18] sm:$0xf]
    %v180 = vld [vmem:[#allocation7 + $0x1c] sm:$0xf]
    %v181 = vld [vmem:[#allocation7 + $0x20] sm:$0xf]
    %v182 = vld [vmem:[#allocation7 + $0x24] sm:$0xf]
    %v183 = vld [vmem:[#allocation7 + $0x28] sm:$0xf]
    %v184 = vld [vmem:[#allocation7 + $0x2c] sm:$0xf]
    %v185 = vld [vmem:[#allocation7 + $0x30] sm:$0xf]
    %v186 = vld [vmem:[#allocation7 + $0x34] sm:$0xf]
    %v187 = vld [vmem:[#allocation7 + $0x38] sm:$0xf]
    %v188 = vld [vmem:[#allocation7 + $0x3c] sm:$0xf]
    %v205 = vunpack.c.l.b16 %v173
    %v206 = vunpack.c.l.b16 %v174
    %v207 = vunpack.c.l.b16 %v175
    %v208 = vunpack.c.l.b16 %v176
    %v209 = vunpack.c.l.b16 %v177
    %v210 = vunpack.c.l.b16 %v178
    %v211 = vunpack.c.l.b16 %v179
    %v212 = vunpack.c.l.b16 %v180
    %v213 = vunpack.c.l.b16 %v181
    %v214 = vunpack.c.l.b16 %v182
    %v215 = vunpack.c.l.b16 %v183
    %v216 = vunpack.c.l.b16 %v184
    %v217 = vunpack.c.l.b16 %v185
    %v218 = vunpack.c.l.b16 %v186
    %v219 = vunpack.c.l.b16 %v187
    %v220 = vunpack.c.l.b16 %v188
    %v221 = vpack.c.b16 %v206, %v205
    %v222 = vpack.c.b16 %v208, %v207
    %v223 = vpack.c.b16 %v210, %v209
    %v224 = vpack.c.b16 %v212, %v211
    %v225 = vpack.c.b16 %v214, %v213
    %v226 = vpack.c.b16 %v216, %v215
    %v227 = vpack.c.b16 %v218, %v217
    %v228 = vpack.c.b16 %v220, %v219
    %237 = vmatpush.bf16.msra.mxu0 %v228
    %238 = vmatpush.bf16.msra.mxu0 %v227
    %239 = vmatpush.bf16.msra.mxu0 %v226
    %240 = vmatpush.bf16.msra.mxu0 %v225
    %241 = vmatpush.bf16.msra.mxu0 %v224
    %242 = vmatpush.bf16.msra.mxu0 %v223
    %243 = vmatpush.bf16.msra.mxu0 %v222
    %244 = vmatpush.bf16.msra.mxu0 %v221
    %245 = vmatmul.bf16.gmra.mxu0 %v172
    %v246 = vpop.f32.mrf.mxu0
    %v247 = vadd.f32 0.0, %v246
    %v248 = vpop.f32.mrf.mxu0
    %v249 = vadd.f32 0.0, %v248
    %250 = vdwg.mxu0
    %v251 = vmax.f32 %v247, 0.0
    %v252 = vmax.f32 %v249, 0.0
    %v253 = vpack.c.bf16 %v252, %v251
    %v254 = vld [vmem:[#allocation8] sm:$0xf]
    %v255 = vld [vmem:[#allocation8 + $0x4] sm:$0xf]
    %v256 = vld [vmem:[#allocation8 + $0x8] sm:$0xf]
    %v257 = vld [vmem:[#allocation8 + $0xc] sm:$0xf]
    %v258 = vld [vmem:[#allocation8 + $0x10] sm:$0xf]
    %v259 = vld [vmem:[#allocation8 + $0x14] sm:$0xf]
    %v260 = vld [vmem:[#allocation8 + $0x18] sm:$0xf]
    %v261 = vld [vmem:[#allocation8 + $0x1c] sm:$0xf]
    %v262 = vld [vmem:[#allocation8 + $0x20] sm:$0xf]
    %v263 = vld [vmem:[#allocation8 + $0x24] sm:$0xf]
    %v264 = vld [vmem:[#allocation8 + $0x28] sm:$0xf]
    %v265 = vld [vmem:[#allocation8 + $0x2c] sm:$0xf]
    %v266 = vld [vmem:[#allocation8 + $0x30] sm:$0xf]
    %v267 = vld [vmem:[#allocation8 + $0x34] sm:$0xf]
    %v268 = vld [vmem:[#allocation8 + $0x38] sm:$0xf]
    %v269 = vld [vmem:[#allocation8 + $0x3c] sm:$0xf]
    %v270 = vld [vmem:[%s4] sm:$0x1]
    %v272 = vperm.slane %v270, 0
    %v290 = vunpack.c.l.b16 %v254
    %v291 = vunpack.c.l.b16 %v255
    %v292 = vunpack.c.l.b16 %v256
    %v293 = vunpack.c.l.b16 %v257
    %v294 = vunpack.c.l.b16 %v258
    %v295 = vunpack.c.l.b16 %v259
    %v296 = vunpack.c.l.b16 %v260
    %v297 = vunpack.c.l.b16 %v261
    %v298 = vunpack.c.l.b16 %v262
    %v299 = vunpack.c.l.b16 %v263
    %v300 = vunpack.c.l.b16 %v264
    %v301 = vunpack.c.l.b16 %v265
    %v302 = vunpack.c.l.b16 %v266
    %v303 = vunpack.c.l.b16 %v267
    %v304 = vunpack.c.l.b16 %v268
    %v305 = vunpack.c.l.b16 %v269
    %v306 = vpack.c.b16 %v291, %v290
    %v307 = vpack.c.b16 %v293, %v292
    %v308 = vpack.c.b16 %v295, %v294
    %v309 = vpack.c.b16 %v297, %v296
    %v310 = vpack.c.b16 %v299, %v298
    %v311 = vpack.c.b16 %v301, %v300
    %v312 = vpack.c.b16 %v303, %v302
    %v313 = vpack.c.b16 %v305, %v304
    %322 = vmatpush.bf16.msra.mxu0 %v313
    %323 = vmatpush.bf16.msra.mxu0 %v312
    %324 = vmatpush.bf16.msra.mxu0 %v311
    %325 = vmatpush.bf16.msra.mxu0 %v310
    %326 = vmatpush.bf16.msra.mxu0 %v309
    %327 = vmatpush.bf16.msra.mxu0 %v308
    %328 = vmatpush.bf16.msra.mxu0 %v307
    %329 = vmatpush.bf16.msra.mxu0 %v306
    %330 = vmatmul.bf16.gmra.mxu0 %v253
    %v331 = vpop.f32.mrf.mxu0
    %v332 = vadd.f32 %v272, %v331
    %v333 = vpop.f32.mrf.mxu0
    %v334 = vadd.f32 %v272, %v333
    %335 = vdwg.mxu0
    %336 = vst [vmem:[#allocation10] sm:$0xff] %v332
    %337 = vst [vmem:[#allocation10 + $0x8] sm:$0xff] %v334
    // Predicated region
    $region38: #{tpu_custom_call.1} parent=1 // pred_check
      _
    $region39: #{tpu_custom_call.1} parent=1 // pred_check_branch
      %339 = sbr.rel (0) target = $region41
    $region40: #{tpu_custom_call.1} parent=1 // pred_region
      %341 = vsyncadd [#allocation4], 0
      %s342 = sshll.u32 [#allocation10], 4
      %s343 = int_to_ptr.vmem [resolvable:$true] %s342
      %s344 = sshll.u32 %s5, 4
      %s345 = int_to_ptr.hbm [resolvable:$true] %s344
      %350 = dma.vmem_to_hbm [thread:$0]  %s343, 256, %s345, [#allocation4], 128, 128, 8
    $region41: #{tpu_custom_call.1} parent=1 // pred_fallthru
      _
    // Predicated region
    $region42: #{tpu_custom_call.1} parent=1 // pred_check
      _
    $region43: #{tpu_custom_call.1} parent=1 // pred_check_branch
      %352 = sbr.rel (0) target = $region45
    $region44: #{tpu_custom_call.1} parent=1 // pred_region
      %354 = dma.done [#allocation4], 256
    $region45: #{tpu_custom_call.1} parent=1 // pred_fallthru
      _
    %355 = vsyncpa [#allocation3], 1
    %356 = vsyncpa [#allocation6], 1
    %357 = vsyncpa [#allocation9], 1
    %358 = vsyncpa [#allocation4], 1

// kernel: tpu_custom_call.1
$region0: #{tpu_custom_call.1}
  #allocation0 [shape = 'u32[]', space=smem, size = 0x4, offset = 0x4, fixed_abs, tag = 'smem constant byte address 0x4 - core index']
  #allocation1 [shape = 'u32[72,128]{1,0:T(1,128)}', space=vmem, size = 0x9000, scoped, tag = 'internal scratch']
  %s0 = inlined_call_operand.hbm [shape: bf16[16,128], index: 0, kind: input, shape index: {}]
  %s1 = inlined_call_operand.hbm [shape: bf16[128,128], index: 1, kind: input, shape index: {}]
  %s2 = inlined_call_operand.hbm [shape: bf16[128,128], index: 2, kind: input, shape index: {}]
  %s3 = inlined_call_operand.hbm [shape: bf16[128,128], index: 3, kind: input, shape index: {}]
  %s4 = inlined_call_operand.vmem [shape: f32[1,128], index: 4, kind: input, shape index: {}]
  %s5 = inlined_call_operand.hbm [shape: f32[16,128], index: 5, kind: output, shape index: {}]
  %s6 = sld [smem:[#allocation0]]
  $region46: #{tpu_custom_call.1} parent=0
    _
  %s8 = ssub.s32 1, %s6
  %s9 = scalar_select 0, %s8, %s6
  $region1: #{tpu_custom_call.1} parent=0
    #allocation2 [shape = 'u8[4096]{0}', space=vmem, size = 0x1000, scoped, tag = 'input window, operand 0, single buffered']
    #allocation3 [shape = 's32[1]{0}', space=sflag, size = 0x4, scoped, tag = 'scoped memory for tpu_custom_call.1']
    #allocation4 [shape = 's32[1]{0}', space=sflag, size = 0x4, scoped, tag = 'scoped memory for tpu_custom_call.1']
    #allocation5 [shape = 'u8[32768]{0}', space=vmem, size = 0x8000, scoped, tag = 'input window, operand 1, single buffered']
    #allocation6 [shape = 's32[1]{0}', space=sflag, size = 0x4, scoped, tag = 'scoped memory for tpu_custom_call.1']
    #allocation7 [shape = 'u8[32768]{0}', space=vmem, size = 0x8000, scoped, tag = 'input window, operand 2, single buffered']
    #allocation8 [shape = 'u8[32768]{0}', space=vmem, size = 0x8000, scoped, tag = 'input window, operand 3, single buffered']
    #allocation9 [shape = 's32[1]{0}', space=sflag, size = 0x4, scoped, tag = 'scoped memory for tpu_custom_call.1']
    #allocation10 [shape = 'u8[8192]{0}', space=vmem, size = 0x2000, scoped, tag = 'output window, operand 0, single buffered']
    %10 = vsyncpa [#allocation3], 0
    %11 = vsyncpa [#allocation6], 0
    %12 = vsyncpa [#allocation9], 0
    %13 = vsyncpa [#allocation4], 0
    // Predicated region
    $region2: #{tpu_custom_call.1} parent=1 // pred_check
      _
    $region3: #{tpu_custom_call.1} parent=1 // pred_check_branch
      %15 = sbr.rel (0) target = $region5
    $region4: #{tpu_custom_call.1} parent=1 // pred_region
      %17 = vsyncadd [#allocation3], 0
      %s18 = sshll.u32 %s0, 4
      %s19 = int_to_ptr.hbm [resolvable:$true] %s18
      %s20 = sshll.u32 [#allocation2], 4
      %s21 = int_to_ptr.vmem [resolvable:$true] %s20
      %26 = dma.hbm_to_vmem [thread:$0]  %s19, 128, %s21, [#allocation3], 64, 64, 4
    $region5: #{tpu_custom_call.1} parent=1 // pred_fallthru
      _
    // Predicated region
    $region6: #{tpu_custom_call.1} parent=1 // pred_check
      _
    $region7: #{tpu_custom_call.1} parent=1 // pred_check_branch
      %28 = sbr.rel (0) target = $region9
    $region8: #{tpu_custom_call.1} parent=1 // pred_region
      %30 = vsyncadd [#allocation6], 0
      %s31 = sshll.u32 %s1, 4
      %s32 = int_to_ptr.hbm [resolvable:$true] %s31
      %s33 = sshll.u32 [#allocation5], 4
      %s34 = int_to_ptr.vmem [resolvable:$true] %s33
      %39 = dma.hbm_to_vmem [thread:$0]  %s32, 1024, %s34, [#allocation6], 64, 64, 4
    $region9: #{tpu_custom_call.1} parent=1 // pred_fallthru
      _
    // Predicated region
    $region10: #{tpu_custom_call.1} parent=1 // pred_check
      _
    $region11: #{tpu_custom_call.1} parent=1 // pred_check_branch
      %41 = sbr.rel (0) target = $region13
    $region12: #{tpu_custom_call.1} parent=1 // pred_region
      %43 = vsyncadd [#allocation6], 0
      %s44 = sshll.u32 %s2, 4
      %s45 = int_to_ptr.hbm [resolvable:$true] %s44
      %s46 = sshll.u32 [#allocation7], 4
      %s47 = int_to_ptr.vmem [resolvable:$true] %s46
      %52 = dma.hbm_to_vmem [thread:$0]  %s45, 1024, %s47, [#allocation6], 64, 64, 4
    $region13: #{tpu_custom_call.1} parent=1 // pred_fallthru
      _
    // Predicated region
    $region14: #{tpu_custom_call.1} parent=1 // pred_check
      _
    $region15: #{tpu_custom_call.1} parent=1 // pred_check_branch
      %54 = sbr.rel (0) target = $region17
    $region16: #{tpu_custom_call.1} parent=1 // pred_region
      %56 = vsyncadd [#allocation9], 0
      %s57 = sshll.u32 %s3, 4
      %s58 = int_to_ptr.hbm [resolvable:$true] %s57
      %s59 = sshll.u32 [#allocation8], 4
      %s60 = int_to_ptr.vmem [resolvable:$true] %s59
      %65 = dma.hbm_to_vmem [thread:$0]  %s58, 1024, %s60, [#allocation9], 64, 64, 4
    $region17: #{tpu_custom_call.1} parent=1 // pred_fallthru
      _
    // Predicated region
    $region18: #{tpu_custom_call.1} parent=1 // pred_check
      _
    $region19: #{tpu_custom_call.1} parent=1 // pred_check_branch
      %67 = sbr.rel (0) target = $region21
    $region20: #{tpu_custom_call.1} parent=1 // pred_region
      _
    $region21: #{tpu_custom_call.1} parent=1 // pred_fallthru
      _
    // Predicated region
    $region22: #{tpu_custom_call.1} parent=1 // pred_check
      _
    $region23: #{tpu_custom_call.1} parent=1 // pred_check_branch
      %69 = sbr.rel (0) target = $region25
    $region24: #{tpu_custom_call.1} parent=1 // pred_region
      %71 = dma.done [#allocation3], 128
    $region25: #{tpu_custom_call.1} parent=1 // pred_fallthru
      _
    // Predicated region
    $region26: #{tpu_custom_call.1} parent=1 // pred_check
      _
    $region27: #{tpu_custom_call.1} parent=1 // pred_check_branch
      %73 = sbr.rel (0) target = $region29
    $region28: #{tpu_custom_call.1} parent=1 // pred_region
      %75 = dma.done [#allocation6], 1024
    $region29: #{tpu_custom_call.1} parent=1 // pred_fallthru
      _
    // Predicated region
    $region30: #{tpu_custom_call.1} parent=1 // pred_check
      _
    $region31: #{tpu_custom_call.1} parent=1 // pred_check_branch
      %77 = sbr.rel (0) target = $region33
    $region32: #{tpu_custom_call.1} parent=1 // pred_region
      %79 = dma.done [#allocation6], 1024
    $region33: #{tpu_custom_call.1} parent=1 // pred_fallthru
      _
    // Predicated region
    $region34: #{tpu_custom_call.1} parent=1 // pred_check
      _
    $region35: #{tpu_custom_call.1} parent=1 // pred_check_branch
      %81 = sbr.rel (0) target = $region37
    $region36: #{tpu_custom_call.1} parent=1 // pred_region
      %83 = dma.done [#allocation9], 1024
    $region37: #{tpu_custom_call.1} parent=1 // pred_fallthru
      _
    %v84 = vld [vmem:[#allocation2] sm:$0xf]
    %v85 = vld [vmem:[#allocation2 + $0x4] sm:$0xf]
    %v86 = vld [vmem:[#allocation5] sm:$0xf]
    %v87 = vld [vmem:[#allocation5 + $0x4] sm:$0xf]
    %v88 = vld [vmem:[#allocation5 + $0x8] sm:$0xf]
    %v89 = vld [vmem:[#allocation5 + $0xc] sm:$0xf]
    %v90 = vld [vmem:[#allocation5 + $0x10] sm:$0xf]
    %v91 = vld [vmem:[#allocation5 + $0x14] sm:$0xf]
    %v92 = vld [vmem:[#allocation5 + $0x18] sm:$0xf]
    %v93 = vld [vmem:[#allocation5 + $0x1c] sm:$0xf]
    %v94 = vld [vmem:[#allocation5 + $0x20] sm:$0xf]
    %v95 = vld [vmem:[#allocation5 + $0x24] sm:$0xf]
    %v96 = vld [vmem:[#allocation5 + $0x28] sm:$0xf]
    %v97 = vld [vmem:[#allocation5 + $0x2c] sm:$0xf]
    %v98 = vld [vmem:[#allocation5 + $0x30] sm:$0xf]
    %v99 = vld [vmem:[#allocation5 + $0x34] sm:$0xf]
    %v100 = vld [vmem:[#allocation5 + $0x38] sm:$0xf]
    %v101 = vld [vmem:[#allocation5 + $0x3c] sm:$0xf]
    %v104 = vunpack.c.l.b16 %v84
    %v105 = vunpack.c.l.b16 %v85
    %v106 = vpack.c.b16 %v105, %v104
    %v124 = vunpack.c.l.b16 %v86
    %v125 = vunpack.c.l.b16 %v87
    %v126 = vunpack.c.l.b16 %v88
    %v127 = vunpack.c.l.b16 %v89
    %v128 = vunpack.c.l.b16 %v90
    %v129 = vunpack.c.l.b16 %v91
    %v130 = vunpack.c.l.b16 %v92
    %v131 = vunpack.c.l.b16 %v93
    %v132 = vunpack.c.l.b16 %v94
    %v133 = vunpack.c.l.b16 %v95
    %v134 = vunpack.c.l.b16 %v96
    %v135 = vunpack.c.l.b16 %v97
    %v136 = vunpack.c.l.b16 %v98
    %v137 = vunpack.c.l.b16 %v99
    %v138 = vunpack.c.l.b16 %v100
    %v139 = vunpack.c.l.b16 %v101
    %v140 = vpack.c.b16 %v125, %v124
    %v141 = vpack.c.b16 %v127, %v126
    %v142 = vpack.c.b16 %v129, %v128
    %v143 = vpack.c.b16 %v131, %v130
    %v144 = vpack.c.b16 %v133, %v132
    %v145 = vpack.c.b16 %v135, %v134
    %v146 = vpack.c.b16 %v137, %v136
    %v147 = vpack.c.b16 %v139, %v138
    %156 = vmatpush.bf16.msra.mxu0 %v147
    %157 = vmatpush.bf16.msra.mxu0 %v146
    %158 = vmatpush.bf16.msra.mxu0 %v145
    %159 = vmatpush.bf16.msra.mxu0 %v144
    %160 = vmatpush.bf16.msra.mxu0 %v143
    %161 = vmatpush.bf16.msra.mxu0 %v142
    %162 = vmatpush.bf16.msra.mxu0 %v141
    %163 = vmatpush.bf16.msra.mxu0 %v140
    %164 = vmatmul.bf16.gmra.mxu0 %v106
    %v165 = vpop.f32.mrf.mxu0
    %v166 = vadd.f32 0.0, %v165
    %v167 = vpop.f32.mrf.mxu0
    %v168 = vadd.f32 0.0, %v167
    %169 = vdwg.mxu0
    %v170 = vmax.f32 %v166, 0.0
    %v171 = vmax.f32 %v168, 0.0
    %v172 = vpack.c.bf16 %v171, %v170
    %v173 = vld [vmem:[#allocation7] sm:$0xf]
    %v174 = vld [vmem:[#allocation7 + $0x4] sm:$0xf]
    %v175 = vld [vmem:[#allocation7 + $0x8] sm:$0xf]
    %v176 = vld [vmem:[#allocation7 + $0xc] sm:$0xf]
    %v177 = vld [vmem:[#allocation7 + $0x10] sm:$0xf]
    %v178 = vld [vmem:[#allocation7 + $0x14] sm:$0xf]
    %v179 = vld [vmem:[#allocation7 + $0x18] sm:$0xf]
    %v180 = vld [vmem:[#allocation7 + $0x1c] sm:$0xf]
    %v181 = vld [vmem:[#allocation7 + $0x20] sm:$0xf]
    %v182 = vld [vmem:[#allocation7 + $0x24] sm:$0xf]
    %v183 = vld [vmem:[#allocation7 + $0x28] sm:$0xf]
    %v184 = vld [vmem:[#allocation7 + $0x2c] sm:$0xf]
    %v185 = vld [vmem:[#allocation7 + $0x30] sm:$0xf]
    %v186 = vld [vmem:[#allocation7 + $0x34] sm:$0xf]
    %v187 = vld [vmem:[#allocation7 + $0x38] sm:$0xf]
    %v188 = vld [vmem:[#allocation7 + $0x3c] sm:$0xf]
    %v205 = vunpack.c.l.b16 %v173
    %v206 = vunpack.c.l.b16 %v174
    %v207 = vunpack.c.l.b16 %v175
    %v208 = vunpack.c.l.b16 %v176
    %v209 = vunpack.c.l.b16 %v177
    %v210 = vunpack.c.l.b16 %v178
    %v211 = vunpack.c.l.b16 %v179
    %v212 = vunpack.c.l.b16 %v180
    %v213 = vunpack.c.l.b16 %v181
    %v214 = vunpack.c.l.b16 %v182
    %v215 = vunpack.c.l.b16 %v183
    %v216 = vunpack.c.l.b16 %v184
    %v217 = vunpack.c.l.b16 %v185
    %v218 = vunpack.c.l.b16 %v186
    %v219 = vunpack.c.l.b16 %v187
    %v220 = vunpack.c.l.b16 %v188
    %v221 = vpack.c.b16 %v206, %v205
    %v222 = vpack.c.b16 %v208, %v207
    %v223 = vpack.c.b16 %v210, %v209
    %v224 = vpack.c.b16 %v212, %v211
    %v225 = vpack.c.b16 %v214, %v213
    %v226 = vpack.c.b16 %v216, %v215
    %v227 = vpack.c.b16 %v218, %v217
    %v228 = vpack.c.b16 %v220, %v219
    %237 = vmatpush.bf16.msra.mxu0 %v228
    %238 = vmatpush.bf16.msra.mxu0 %v227
    %239 = vmatpush.bf16.msra.mxu0 %v226
    %240 = vmatpush.bf16.msra.mxu0 %v225
    %241 = vmatpush.bf16.msra.mxu0 %v224
    %242 = vmatpush.bf16.msra.mxu0 %v223
    %243 = vmatpush.bf16.msra.mxu0 %v222
    %244 = vmatpush.bf16.msra.mxu0 %v221
    %245 = vmatmul.bf16.gmra.mxu0 %v172
    %v246 = vpop.f32.mrf.mxu0
    %v247 = vadd.f32 0.0, %v246
    %v248 = vpop.f32.mrf.mxu0
    %v249 = vadd.f32 0.0, %v248
    %250 = vdwg.mxu0
    %v251 = vmax.f32 %v247, 0.0
    %v252 = vmax.f32 %v249, 0.0
    %v253 = vpack.c.bf16 %v252, %v251
    %v254 = vld [vmem:[#allocation8] sm:$0xf]
    %v255 = vld [vmem:[#allocation8 + $0x4] sm:$0xf]
    %v256 = vld [vmem:[#allocation8 + $0x8] sm:$0xf]
    %v257 = vld [vmem:[#allocation8 + $0xc] sm:$0xf]
    %v258 = vld [vmem:[#allocation8 + $0x10] sm:$0xf]
    %v259 = vld [vmem:[#allocation8 + $0x14] sm:$0xf]
    %v260 = vld [vmem:[#allocation8 + $0x18] sm:$0xf]
    %v261 = vld [vmem:[#allocation8 + $0x1c] sm:$0xf]
    %v262 = vld [vmem:[#allocation8 + $0x20] sm:$0xf]
    %v263 = vld [vmem:[#allocation8 + $0x24] sm:$0xf]
    %v264 = vld [vmem:[#allocation8 + $0x28] sm:$0xf]
    %v265 = vld [vmem:[#allocation8 + $0x2c] sm:$0xf]
    %v266 = vld [vmem:[#allocation8 + $0x30] sm:$0xf]
    %v267 = vld [vmem:[#allocation8 + $0x34] sm:$0xf]
    %v268 = vld [vmem:[#allocation8 + $0x38] sm:$0xf]
    %v269 = vld [vmem:[#allocation8 + $0x3c] sm:$0xf]
    %v270 = vld [vmem:[%s4] sm:$0x1]
    %v272 = vperm.slane %v270, 0
    %v290 = vunpack.c.l.b16 %v254
    %v291 = vunpack.c.l.b16 %v255
    %v292 = vunpack.c.l.b16 %v256
    %v293 = vunpack.c.l.b16 %v257
    %v294 = vunpack.c.l.b16 %v258
    %v295 = vunpack.c.l.b16 %v259
    %v296 = vunpack.c.l.b16 %v260
    %v297 = vunpack.c.l.b16 %v261
    %v298 = vunpack.c.l.b16 %v262
    %v299 = vunpack.c.l.b16 %v263
    %v300 = vunpack.c.l.b16 %v264
    %v301 = vunpack.c.l.b16 %v265
    %v302 = vunpack.c.l.b16 %v266
    %v303 = vunpack.c.l.b16 %v267
    %v304 = vunpack.c.l.b16 %v268
    %v305 = vunpack.c.l.b16 %v269
    %v306 = vpack.c.b16 %v291, %v290
    %v307 = vpack.c.b16 %v293, %v292
    %v308 = vpack.c.b16 %v295, %v294
    %v309 = vpack.c.b16 %v297, %v296
    %v310 = vpack.c.b16 %v299, %v298
    %v311 = vpack.c.b16 %v301, %v300
    %v312 = vpack.c.b16 %v303, %v302
    %v313 = vpack.c.b16 %v305, %v304
    %322 = vmatpush.bf16.msra.mxu0 %v313
    %323 = vmatpush.bf16.msra.mxu0 %v312
    %324 = vmatpush.bf16.msra.mxu0 %v311
    %325 = vmatpush.bf16.msra.mxu0 %v310
    %326 = vmatpush.bf16.msra.mxu0 %v309
    %327 = vmatpush.bf16.msra.mxu0 %v308
    %328 = vmatpush.bf16.msra.mxu0 %v307
    %329 = vmatpush.bf16.msra.mxu0 %v306
    %330 = vmatmul.bf16.gmra.mxu0 %v253
    %v331 = vpop.f32.mrf.mxu0
    %v332 = vadd.f32 %v272, %v331
    %v333 = vpop.f32.mrf.mxu0
    %v334 = vadd.f32 %v272, %v333
    %335 = vdwg.mxu0
    %336 = vst [vmem:[#allocation10] sm:$0xff] %v332
    %337 = vst [vmem:[#allocation10 + $0x8] sm:$0xff] %v334
    // Predicated region
    $region38: #{tpu_custom_call.1} parent=1 // pred_check
      _
    $region39: #{tpu_custom_call.1} parent=1 // pred_check_branch
      %339 = sbr.rel (0) target = $region41
    $region40: #{tpu_custom_call.1} parent=1 // pred_region
      %341 = vsyncadd [#allocation4], 0
      %s342 = sshll.u32 [#allocation10], 4
      %s343 = int_to_ptr.vmem [resolvable:$true] %s342
      %s344 = sshll.u32 %s5, 4
      %s345 = int_to_ptr.hbm [resolvable:$true] %s344
      %350 = dma.vmem_to_hbm [thread:$0]  %s343, 256, %s345, [#allocation4], 128, 128, 8
    $region41: #{tpu_custom_call.1} parent=1 // pred_fallthru
      _
    // Predicated region
    $region42: #{tpu_custom_call.1} parent=1 // pred_check
      _
    $region43: #{tpu_custom_call.1} parent=1 // pred_check_branch
      %352 = sbr.rel (0) target = $region45
    $region44: #{tpu_custom_call.1} parent=1 // pred_region
      %354 = dma.done [#allocation4], 256
    $region45: #{tpu_custom_call.1} parent=1 // pred_fallthru
      _
    %355 = vsyncpa [#allocation3], 1
    %356 = vsyncpa [#allocation6], 1
    %357 = vsyncpa [#allocation9], 1
    %358 = vsyncpa [#allocation4], 1

</llo_original>
